<compile_context>
chip_gen: v5e
topology: v5e:2x2
jax: 0.10.0
libtpu: 0.0.40
codegen_flags: <defaults>
</compile_context>

<pallas_src>
import jax
import jax.numpy as jnp
from jax.experimental import pallas as pl
from jax.experimental.pallas import tpu as pltpu

ACTION_DIM = 7
HIDDEN = 16
ACTION_RANGE = (1.4835298, 1.4835298, 1.7453293, 1.3089969,
                2.268928, 2.3561945, 2.3561945)


def _round_up(x, m):
    return ((x + m - 1) // m) * m


def actor_kernel(state_ref, w1_ref, b1_ref, w2_ref, b2_ref, w3_ref, b3_ref,
                 rng_ref, out_ref):
    # Transposed layout: batch on the 128-lane axis. All activations are
    # (rows<=16, TB) — lane-dense vregs, unmasked stores.
    x = state_ref[...]                                                # (S, TB)
    a = jnp.dot(w1_ref[...], x, preferred_element_type=jnp.float32)   # (16, TB)
    a = jnp.maximum(a + b1_ref[...], 0.0)
    a = jnp.dot(w2_ref[...], a, preferred_element_type=jnp.float32)   # (16, TB)
    a = jnp.maximum(a + b2_ref[...], 0.0)
    a = jnp.dot(w3_ref[...], a, preferred_element_type=jnp.float32)   # (7, TB)
    a = jnp.tanh(a + b3_ref[...]) * rng_ref[...]
    out_ref[...] = a.astype(out_ref.dtype)


def actor_reference(state, params):
    """Pure-JAX reference (also the tiny-batch fast path). state: (B, S)."""
    rng_row = jnp.asarray(ACTION_RANGE, jnp.float32).reshape(1, ACTION_DIM)
    a = jnp.maximum(state @ params["w1"].T + params["b1"].T, 0.0)
    a = jnp.maximum(a @ params["w2"].T + params["b2"].T, 0.0)
    a = jnp.tanh(a @ params["w3"].T + params["b3"].T) * rng_row
    return a


def actor_forward(state, params, *, block_cols=8192, min_kernel_batch=512):
    """state: (B, state_dim) f32. params: PyTorch-layout weights. -> (B, 7)."""
    B, state_dim = state.shape

    # Launch + pipeline setup dominates at tiny B; fused XLA is strictly faster.
    if B < min_kernel_batch:
        return actor_reference(state, params)

    w1, b1, w2, b2, w3, b3 = (params["w1"], params["b1"], params["w2"],
                              params["b2"], params["w3"], params["b3"])
    rng_col = jnp.asarray(ACTION_RANGE, jnp.float32).reshape(ACTION_DIM, 1)

    # One wrapper-side transpose so the batch becomes the lane (last) dim.
    state_t = state.T  # (state_dim, B)

    # 128-aligned batch tile; capped at ceil(B/2) so the grid has >= 2 steps
    # and dimension_semantics=("parallel",) can use both TCs on v7x.
    TB = min(block_cols, _round_up(pl.cdiv(B, 2), 128))
    TB = max(128, _round_up(TB, 128))
    grid = (pl.cdiv(B, TB),)

    def resident(arr):
        # Constant block index => DMA'd once, resident across grid steps.
        return pl.BlockSpec(arr.shape, lambda i: (0, 0))

    flops = 2 * B * (state_dim * HIDDEN + HIDDEN * HIDDEN + HIDDEN * ACTION_DIM)
    bytes_accessed = 4 * (B * (state_dim + ACTION_DIM)
                          + w1.size + b1.size + w2.size + b2.size
                          + w3.size + b3.size + rng_col.size)

    out_t = pl.pallas_call(
        actor_kernel,
        out_shape=jax.ShapeDtypeStruct((ACTION_DIM, B), jnp.float32),
        grid=grid,
        in_specs=[
            pl.BlockSpec((state_dim, TB), lambda i: (0, i)),   # streamed
            resident(w1), resident(b1),
            resident(w2), resident(b2),
            resident(w3), resident(b3),
            resident(rng_col),
        ],
        out_specs=pl.BlockSpec((ACTION_DIM, TB), lambda i: (0, i)),
        compiler_params=pltpu.CompilerParams(
            dimension_semantics=("parallel",),    # megacore sharding on v7x
            vmem_limit_bytes=32 * 1024 * 1024,
        ),
        cost_estimate=pl.CostEstimate(
            flops=flops,
            transcendentals=B * ACTION_DIM,
            bytes_accessed=bytes_accessed,
        ),
    )(state_t, w1, b1, w2, b2, w3, b3, rng_col)

    return out_t.T  # (B, ACTION_DIM)


def init_params(key, state_dim, action_dim):
    """Deterministic init mimicking torch.nn.Linear (uniform +/- 1/sqrt(fan_in)).
    Weights stored PyTorch-style as (out_features, in_features); biases (out, 1)."""
    ks = jax.random.split(key, 6)

    def linear(kw, kb, fan_in, fan_out):
        bound = 1.0 / jnp.sqrt(jnp.float32(fan_in))
        w = jax.random.uniform(kw, (fan_out, fan_in), jnp.float32, -bound, bound)
        b = jax.random.uniform(kb, (fan_out, 1), jnp.float32, -bound, bound)
        return w, b

    w1, b1 = linear(ks[0], ks[1], state_dim, HIDDEN)
    w2, b2 = linear(ks[2], ks[3], HIDDEN, HIDDEN)
    w3, b3 = linear(ks[4], ks[5], HIDDEN, action_dim)
    return {"w1": w1, "b1": b1, "w2": w2, "b2": b2, "w3": w3, "b3": b3}


if __name__ == "__main__":
    key = jax.random.PRNGKey(0)
    k_params, k_state, k_small = jax.random.split(key, 3)

    state_dim = 24
    params = init_params(k_params, state_dim, ACTION_DIM)

    # Kernel path: B large enough to dispatch Pallas, not a multiple of the
    # batch tile (exercises the ragged final block + 2-step parallel grid).
    batch = 1000
    state = jax.random.normal(k_state, (batch, state_dim), dtype=jnp.float32)
    out = jax.block_until_ready(actor_forward(state, params))
    ref = actor_reference(state, params)
    assert out.shape == (batch, ACTION_DIM)
    assert jnp.allclose(out, ref, atol=1e-5, rtol=1e-5), "kernel path mismatch"

    # Tiny-batch fallback path.
    small = jax.random.normal(k_small, (8, state_dim), dtype=jnp.float32)
    out_s = jax.block_until_ready(actor_forward(small, params))
    assert out_s.shape == (8, ACTION_DIM)
    assert jnp.allclose(out_s, actor_reference(small, params),
                        atol=1e-5, rtol=1e-5), "fallback path mismatch"

    print("KERNEL_OK")
</pallas_src>

<mosaic_0001>
module attributes {stable_mosaic.version = 11 : i64} {
  func.func @actor_kernel(%arg0: i32, %arg1: memref<24x512xf32, #tpu.memory_space<vmem>>, %arg2: memref<16x24xf32, #tpu.memory_space<vmem>>, %arg3: memref<16x1xf32, #tpu.memory_space<vmem>>, %arg4: memref<16x16xf32, #tpu.memory_space<vmem>>, %arg5: memref<16x1xf32, #tpu.memory_space<vmem>>, %arg6: memref<7x16xf32, #tpu.memory_space<vmem>>, %arg7: memref<7x1xf32, #tpu.memory_space<vmem>>, %arg8: memref<7x1xf32, #tpu.memory_space<vmem>>, %arg9: memref<7x512xf32, #tpu.memory_space<vmem>>) attributes {dimension_semantics = [#tpu.dimension_semantics<parallel>], iteration_bounds = array<i64: 2>, scalar_prefetch = 0 : i64, scratch_operands = 0 : i64, tpu.core_type = #tpu.core_type<tc>, window_params = [{transform_indices = @transform_0, window_bounds = array<i64: 24, 512>}, {pipeline_mode = #tpu.pipeline_mode<synchronous>, transform_indices = @transform_1, window_bounds = array<i64: 16, 24>}, {pipeline_mode = #tpu.pipeline_mode<synchronous>, transform_indices = @transform_2, window_bounds = array<i64: 16, 1>}, {pipeline_mode = #tpu.pipeline_mode<synchronous>, transform_indices = @transform_3, window_bounds = array<i64: 16, 16>}, {pipeline_mode = #tpu.pipeline_mode<synchronous>, transform_indices = @transform_4, window_bounds = array<i64: 16, 1>}, {pipeline_mode = #tpu.pipeline_mode<synchronous>, transform_indices = @transform_5, window_bounds = array<i64: 7, 16>}, {pipeline_mode = #tpu.pipeline_mode<synchronous>, transform_indices = @transform_6, window_bounds = array<i64: 7, 1>}, {pipeline_mode = #tpu.pipeline_mode<synchronous>, transform_indices = @transform_7, window_bounds = array<i64: 7, 1>}, {transform_indices = @transform_8, window_bounds = array<i64: 7, 512>}]} {
    %c0 = arith.constant 0 : index
    %c0_0 = arith.constant 0 : index
    %0 = vector.load %arg1[%c0, %c0_0] : memref<24x512xf32, #tpu.memory_space<vmem>>, vector<24x512xf32>
    %c0_1 = arith.constant 0 : index
    %c0_2 = arith.constant 0 : index
    %1 = vector.load %arg2[%c0_1, %c0_2] : memref<16x24xf32, #tpu.memory_space<vmem>>, vector<16x24xf32>
    %cst = arith.constant dense<0.000000e+00> : vector<16x512xf32>
    %2 = tpu.matmul %1, %0, %cst {dimension_numbers = #tpu.dot_dimension_numbers<[1], [0], [0], [1], [0, 0, 1, 1], [], []>} : vector<16x24xf32>, vector<24x512xf32>, vector<16x512xf32> -> vector<16x512xf32>
    %c0_3 = arith.constant 0 : index
    %c0_4 = arith.constant 0 : index
    %3 = vector.load %arg3[%c0_3, %c0_4] : memref<16x1xf32, #tpu.memory_space<vmem>>, vector<16x1xf32>
    %4 = vector.broadcast %3 : vector<16x1xf32> to vector<16x512xf32>
    %5 = arith.addf %2, %4 : vector<16x512xf32>
    %cst_5 = arith.constant 0.000000e+00 : f32
    %6 = vector.broadcast %cst_5 : f32 to vector<16x512xf32>
    %7 = arith.maximumf %5, %6 : vector<16x512xf32>
    %c0_6 = arith.constant 0 : index
    %c0_7 = arith.constant 0 : index
    %8 = vector.load %arg4[%c0_6, %c0_7] : memref<16x16xf32, #tpu.memory_space<vmem>>, vector<16x16xf32>
    %cst_8 = arith.constant dense<0.000000e+00> : vector<16x512xf32>
    %9 = tpu.matmul %8, %7, %cst_8 {dimension_numbers = #tpu.dot_dimension_numbers<[1], [0], [0], [1], [0, 0, 1, 1], [], []>} : vector<16x16xf32>, vector<16x512xf32>, vector<16x512xf32> -> vector<16x512xf32>
    %c0_9 = arith.constant 0 : index
    %c0_10 = arith.constant 0 : index
    %10 = vector.load %arg5[%c0_9, %c0_10] : memref<16x1xf32, #tpu.memory_space<vmem>>, vector<16x1xf32>
    %11 = vector.broadcast %10 : vector<16x1xf32> to vector<16x512xf32>
    %12 = arith.addf %9, %11 : vector<16x512xf32>
    %cst_11 = arith.constant 0.000000e+00 : f32
    %13 = vector.broadcast %cst_11 : f32 to vector<16x512xf32>
    %14 = arith.maximumf %12, %13 : vector<16x512xf32>
    %c0_12 = arith.constant 0 : index
    %c0_13 = arith.constant 0 : index
    %15 = vector.load %arg6[%c0_12, %c0_13] : memref<7x16xf32, #tpu.memory_space<vmem>>, vector<7x16xf32>
    %cst_14 = arith.constant dense<0.000000e+00> : vector<7x512xf32>
    %16 = tpu.matmul %15, %14, %cst_14 {dimension_numbers = #tpu.dot_dimension_numbers<[1], [0], [0], [1], [0, 0, 1, 1], [], []>} : vector<7x16xf32>, vector<16x512xf32>, vector<7x512xf32> -> vector<7x512xf32>
    %c0_15 = arith.constant 0 : index
    %c0_16 = arith.constant 0 : index
    %17 = vector.load %arg7[%c0_15, %c0_16] : memref<7x1xf32, #tpu.memory_space<vmem>>, vector<7x1xf32>
    %18 = vector.broadcast %17 : vector<7x1xf32> to vector<7x512xf32>
    %19 = arith.addf %16, %18 : vector<7x512xf32>
    %20 = math.tanh %19 : vector<7x512xf32>
    %c0_17 = arith.constant 0 : index
    %c0_18 = arith.constant 0 : index
    %21 = vector.load %arg8[%c0_17, %c0_18] : memref<7x1xf32, #tpu.memory_space<vmem>>, vector<7x1xf32>
    %22 = vector.broadcast %21 : vector<7x1xf32> to vector<7x512xf32>
    %23 = arith.mulf %20, %22 : vector<7x512xf32>
    %c0_19 = arith.constant 0 : index
    %c0_20 = arith.constant 0 : index
    %24 = vector.load %arg9[%c0_19, %c0_20] : memref<7x512xf32, #tpu.memory_space<vmem>>, vector<7x512xf32>
    tpu.vector_store %arg9[%c0_19, %c0_20], %23 {strides = array<i32>} : memref<7x512xf32, #tpu.memory_space<vmem>>, vector<7x512xf32>,
    return
  }
  func.func @transform_0(%arg0: i32) -> (i32, i32) {
    %c0_i32 = arith.constant 0 : i32
    %c0_i32_0 = arith.constant 0 : i32
    return %c0_i32, %arg0 : i32, i32
  }
  func.func @transform_1(%arg0: i32) -> (i32, i32) {
    %c0_i32 = arith.constant 0 : i32
    %c0_i32_0 = arith.constant 0 : i32
    %c0_i32_1 = arith.constant 0 : i32
    return %c0_i32, %c0_i32_0 : i32, i32
  }
  func.func @transform_2(%arg0: i32) -> (i32, i32) {
    %c0_i32 = arith.constant 0 : i32
    %c0_i32_0 = arith.constant 0 : i32
    %c0_i32_1 = arith.constant 0 : i32
    return %c0_i32, %c0_i32_0 : i32, i32
  }
  func.func @transform_3(%arg0: i32) -> (i32, i32) {
    %c0_i32 = arith.constant 0 : i32
    %c0_i32_0 = arith.constant 0 : i32
    %c0_i32_1 = arith.constant 0 : i32
    return %c0_i32, %c0_i32_0 : i32, i32
  }
  func.func @transform_4(%arg0: i32) -> (i32, i32) {
    %c0_i32 = arith.constant 0 : i32
    %c0_i32_0 = arith.constant 0 : i32
    %c0_i32_1 = arith.constant 0 : i32
    return %c0_i32, %c0_i32_0 : i32, i32
  }
  func.func @transform_5(%arg0: i32) -> (i32, i32) {
    %c0_i32 = arith.constant 0 : i32
    %c0_i32_0 = arith.constant 0 : i32
    %c0_i32_1 = arith.constant 0 : i32
    return %c0_i32, %c0_i32_0 : i32, i32
  }
  func.func @transform_6(%arg0: i32) -> (i32, i32) {
    %c0_i32 = arith.constant 0 : i32
    %c0_i32_0 = arith.constant 0 : i32
    %c0_i32_1 = arith.constant 0 : i32
    return %c0_i32, %c0_i32_0 : i32, i32
  }
  func.func @transform_7(%arg0: i32) -> (i32, i32) {
    %c0_i32 = arith.constant 0 : i32
    %c0_i32_0 = arith.constant 0 : i32
    %c0_i32_1 = arith.constant 0 : i32
    return %c0_i32, %c0_i32_0 : i32, i32
  }
  func.func @transform_8(%arg0: i32) -> (i32, i32) {
    %c0_i32 = arith.constant 0 : i32
    %c0_i32_0 = arith.constant 0 : i32
    return %c0_i32, %arg0 : i32, i32
  }
}

</mosaic_0001>

<llo_original>
// kernel: tpu_custom_call.1
$region0: #{tpu_custom_call.1}
  #allocation0 [shape = 'u32[]', space=smem, size = 0x4, offset = 0x4, fixed_abs, tag = 'smem constant byte address 0x4 - core index']
  #allocation1 [shape = 'u32[72,128]{1,0:T(1,128)}', space=vmem, size = 0x9000, scoped, tag = 'internal scratch']
  %s0 = inlined_call_operand.hbm [shape: f32[24,1000], index: 0, kind: input, shape index: {}]
  %s1 = inlined_call_operand.vmem [shape: f32[16,24], index: 1, kind: input, shape index: {}]
  %s2 = inlined_call_operand.vmem [shape: f32[16,1], index: 2, kind: input, shape index: {}]
  %s3 = inlined_call_operand.vmem [shape: f32[16,16], index: 3, kind: input, shape index: {}]
  %s4 = inlined_call_operand.vmem [shape: f32[16,1], index: 4, kind: input, shape index: {}]
  %s5 = inlined_call_operand.vmem [shape: f32[7,16], index: 5, kind: input, shape index: {}]
  %s6 = inlined_call_operand.vmem [shape: f32[7,1], index: 6, kind: input, shape index: {}]
  %s7 = inlined_call_operand.vmem [shape: f32[7,1], index: 7, kind: input, shape index: {}]
  %s8 = inlined_call_operand.hbm [shape: f32[7,1000], index: 8, kind: output, shape index: {}]
  %s9 = sld [smem:[#allocation0]]
  $region69: #{tpu_custom_call.1} parent=0
    _
  %s11 = ssub.s32 1, %s9
  %s12 = scalar_select 0, %s11, %s9
  $region1: #{tpu_custom_call.1} parent=0
    #allocation2 [shape = 'u8[98304]{0}', space=vmem, size = 0x18000, scoped, tag = 'input window, operand 0']
    #allocation3 [shape = 's32[2]{0}', space=sflag, size = 0x8, scoped, tag = 'scoped memory for tpu_custom_call.1']
    #allocation4 [shape = 's32[2]{0}', space=sflag, size = 0x8, scoped, tag = 'scoped memory for tpu_custom_call.1']
    #allocation5 [shape = 'u8[32768]{0}', space=vmem, size = 0x8000, scoped, tag = 'output window, operand 0']
    %13 = vsyncpa [#allocation3], 0
    %s14 = scalar_lea.sflag [#allocation3], 1
    %15 = vsyncpa %s14, 0
    %16 = vsyncpa [#allocation4], 0
    %s17 = scalar_lea.sflag [#allocation4], 1
    %18 = vsyncpa %s17, 0
    loop: start=0, step=1, limit=4
    $region2: #{tpu_custom_call.1} parent=1 // loop_pre_header
      _
    $region3: #{tpu_custom_call.1} parent=1 // loop_header
      %s20 = sphi 0, %s24
      %p21 = scmp.ge.s32.totalorder %s20, 4
      %s30 = sphi 0, %s32
      %s33 = sphi 0, %s30
      %s34 = sphi 0, %s33
      %s50 = sphi 0, %s34
      %s54 = sphi 0, %s54
      %s56 = sphi 0, %s54
      %s57 = sphi 0, %s56
      %s71 = sphi 0, %s57
      %s75 = sphi 0, %s75
      %s77 = sphi 0, %s75
      %s78 = sphi 0, %s77
      %s92 = sphi 0, %s78
      %s96 = sphi 0, %s96
      %s98 = sphi 0, %s96
      %s99 = sphi 0, %s98
      %s113 = sphi 0, %s99
      %s117 = sphi 0, %s117
      %s119 = sphi 0, %s117
      %s120 = sphi 0, %s119
      %s134 = sphi 0, %s120
      %s138 = sphi 0, %s138
      %s140 = sphi 0, %s138
      %s141 = sphi 0, %s140
      %s155 = sphi 0, %s141
      %s159 = sphi 0, %s159
      %s161 = sphi 0, %s159
      %s162 = sphi 0, %s161
      %s176 = sphi 0, %s162
      %s180 = sphi 0, %s180
      %s182 = sphi 0, %s180
      %s183 = sphi 0, %s182
      %s197 = sphi 0, %s183
      %s203 = sphi 0, %s205
      %s206 = sphi 0, %s203
      %s207 = sphi 0, %s206
      %s223 = sphi 0, %s207
    $region4: #{tpu_custom_call.1} parent=1 // loop_header_branch
      %23 = sbr.rel (%p21) target = $region8
    $region5: #{tpu_custom_call.1} parent=1 // loop_body
      %s25 = ssub.s32 %s20, 1
      %s26 = ssub.s32 %s20, 2
      %s27 = sadd.s32 %s20, 1
      %s28 = ssub.s32 %s20, %s27
      %p29 = scmp.eq.s32.totalorder %s28, 0
      %s31 = sadd.s32 %s30, 1
      %s32 = scalar_select %p29, %s30, %s31
      %p35 = pneg %p29
      %p36 = scmp.eq.s32.totalorder %s20, 1
      %p37 = por %p35, %p36
      %p38 = scmp.ne.s32.totalorder %s30, %s33
      %p39 = scmp.eq.s32.totalorder %s20, 0
      %p40 = por %p38, %p39
      %p41 = scmp.ne.s32.totalorder %s30, %s33
      %p42 = scmp.eq.s32.totalorder %s25, 1
      %p43 = por %p41, %p42
      %p44 = scmp.ne.s32.totalorder %s33, %s34
      %p45 = scmp.eq.s32.totalorder %s25, 0
      %p46 = por %p44, %p45
      %p47 = scmp.ne.s32.totalorder %s33, %s34
      %p48 = scmp.eq.s32.totalorder %s26, 1
      %p49 = por %p47, %p48
      %p51 = scmp.ne.s32.totalorder %s34, %s50
      %p52 = scmp.eq.s32.totalorder %s26, 0
      %p53 = por %p51, %p52
      %s55 = sadd.s32 %s54, 1
      %p58 = scmp.eq.s32.totalorder %s20, 1
      %p59 = scmp.ne.s32.totalorder %s54, %s56
      %p60 = scmp.eq.s32.totalorder %s20, 0
      %p61 = por %p59, %p60
      %p62 = scmp.ne.s32.totalorder %s54, %s56
      %p63 = scmp.eq.s32.totalorder %s25, 1
      %p64 = por %p62, %p63
      %p65 = scmp.ne.s32.totalorder %s56, %s57
      %p66 = scmp.eq.s32.totalorder %s25, 0
      %p67 = por %p65, %p66
      %p68 = scmp.ne.s32.totalorder %s56, %s57
      %p69 = scmp.eq.s32.totalorder %s26, 1
      %p70 = por %p68, %p69
      %p72 = scmp.ne.s32.totalorder %s57, %s71
      %p73 = scmp.eq.s32.totalorder %s26, 0
      %p74 = por %p72, %p73
      %s76 = sadd.s32 %s75, 1
      %p79 = scmp.eq.s32.totalorder %s20, 1
      %p80 = scmp.ne.s32.totalorder %s75, %s77
      %p81 = scmp.eq.s32.totalorder %s20, 0
      %p82 = por %p80, %p81
      %p83 = scmp.ne.s32.totalorder %s75, %s77
      %p84 = scmp.eq.s32.totalorder %s25, 1
      %p85 = por %p83, %p84
      %p86 = scmp.ne.s32.totalorder %s77, %s78
      %p87 = scmp.eq.s32.totalorder %s25, 0
      %p88 = por %p86, %p87
      %p89 = scmp.ne.s32.totalorder %s77, %s78
      %p90 = scmp.eq.s32.totalorder %s26, 1
      %p91 = por %p89, %p90
      %p93 = scmp.ne.s32.totalorder %s78, %s92
      %p94 = scmp.eq.s32.totalorder %s26, 0
      %p95 = por %p93, %p94
      %s97 = sadd.s32 %s96, 1
      %p100 = scmp.eq.s32.totalorder %s20, 1
      %p101 = scmp.ne.s32.totalorder %s96, %s98
      %p102 = scmp.eq.s32.totalorder %s20, 0
      %p103 = por %p101, %p102
      %p104 = scmp.ne.s32.totalorder %s96, %s98
      %p105 = scmp.eq.s32.totalorder %s25, 1
      %p106 = por %p104, %p105
      %p107 = scmp.ne.s32.totalorder %s98, %s99
      %p108 = scmp.eq.s32.totalorder %s25, 0
      %p109 = por %p107, %p108
      %p110 = scmp.ne.s32.totalorder %s98, %s99
      %p111 = scmp.eq.s32.totalorder %s26, 1
      %p112 = por %p110, %p111
      %p114 = scmp.ne.s32.totalorder %s99, %s113
      %p115 = scmp.eq.s32.totalorder %s26, 0
      %p116 = por %p114, %p115
      %s118 = sadd.s32 %s117, 1
      %p121 = scmp.eq.s32.totalorder %s20, 1
      %p122 = scmp.ne.s32.totalorder %s117, %s119
      %p123 = scmp.eq.s32.totalorder %s20, 0
      %p124 = por %p122, %p123
      %p125 = scmp.ne.s32.totalorder %s117, %s119
      %p126 = scmp.eq.s32.totalorder %s25, 1
      %p127 = por %p125, %p126
      %p128 = scmp.ne.s32.totalorder %s119, %s120
      %p129 = scmp.eq.s32.totalorder %s25, 0
      %p130 = por %p128, %p129
      %p131 = scmp.ne.s32.totalorder %s119, %s120
      %p132 = scmp.eq.s32.totalorder %s26, 1
      %p133 = por %p131, %p132
      %p135 = scmp.ne.s32.totalorder %s120, %s134
      %p136 = scmp.eq.s32.totalorder %s26, 0
      %p137 = por %p135, %p136
      %s139 = sadd.s32 %s138, 1
      %p142 = scmp.eq.s32.totalorder %s20, 1
      %p143 = scmp.ne.s32.totalorder %s138, %s140
      %p144 = scmp.eq.s32.totalorder %s20, 0
      %p145 = por %p143, %p144
      %p146 = scmp.ne.s32.totalorder %s138, %s140
      %p147 = scmp.eq.s32.totalorder %s25, 1
      %p148 = por %p146, %p147
      %p149 = scmp.ne.s32.totalorder %s140, %s141
      %p150 = scmp.eq.s32.totalorder %s25, 0
      %p151 = por %p149, %p150
      %p152 = scmp.ne.s32.totalorder %s140, %s141
      %p153 = scmp.eq.s32.totalorder %s26, 1
      %p154 = por %p152, %p153
      %p156 = scmp.ne.s32.totalorder %s141, %s155
      %p157 = scmp.eq.s32.totalorder %s26, 0
      %p158 = por %p156, %p157
      %s160 = sadd.s32 %s159, 1
      %p163 = scmp.eq.s32.totalorder %s20, 1
      %p164 = scmp.ne.s32.totalorder %s159, %s161
      %p165 = scmp.eq.s32.totalorder %s20, 0
      %p166 = por %p164, %p165
      %p167 = scmp.ne.s32.totalorder %s159, %s161
      %p168 = scmp.eq.s32.totalorder %s25, 1
      %p169 = por %p167, %p168
      %p170 = scmp.ne.s32.totalorder %s161, %s162
      %p171 = scmp.eq.s32.totalorder %s25, 0
      %p172 = por %p170, %p171
      %p173 = scmp.ne.s32.totalorder %s161, %s162
      %p174 = scmp.eq.s32.totalorder %s26, 1
      %p175 = por %p173, %p174
      %p177 = scmp.ne.s32.totalorder %s162, %s176
      %p178 = scmp.eq.s32.totalorder %s26, 0
      %p179 = por %p177, %p178
      %s181 = sadd.s32 %s180, 1
      %p184 = scmp.eq.s32.totalorder %s20, 1
      %p185 = scmp.ne.s32.totalorder %s180, %s182
      %p186 = scmp.eq.s32.totalorder %s20, 0
      %p187 = por %p185, %p186
      %p188 = scmp.ne.s32.totalorder %s180, %s182
      %p189 = scmp.eq.s32.totalorder %s25, 1
      %p190 = por %p188, %p189
      %p191 = scmp.ne.s32.totalorder %s182, %s183
      %p192 = scmp.eq.s32.totalorder %s25, 0
      %p193 = por %p191, %p192
      %p194 = scmp.ne.s32.totalorder %s182, %s183
      %p195 = scmp.eq.s32.totalorder %s26, 1
      %p196 = por %p194, %p195
      %p198 = scmp.ne.s32.totalorder %s183, %s197
      %p199 = scmp.eq.s32.totalorder %s26, 0
      %p200 = por %p198, %p199
      %s201 = ssub.s32 %s20, %s27
      %p202 = scmp.eq.s32.totalorder %s201, 0
      %s204 = sadd.s32 %s203, 1
      %s205 = scalar_select %p202, %s203, %s204
      %p208 = pneg %p202
      %p209 = scmp.eq.s32.totalorder %s20, 1
      %p210 = por %p208, %p209
      %p211 = scmp.ne.s32.totalorder %s203, %s206
      %p212 = scmp.eq.s32.totalorder %s20, 0
      %p213 = por %p211, %p212
      %p214 = scmp.ne.s32.totalorder %s203, %s206
      %p215 = scmp.eq.s32.totalorder %s25, 1
      %p216 = por %p214, %p215
      %p217 = scmp.ne.s32.totalorder %s206, %s207
      %p218 = scmp.eq.s32.totalorder %s25, 0
      %p219 = por %p217, %p218
      %p220 = scmp.ne.s32.totalorder %s206, %s207
      %p221 = scmp.eq.s32.totalorder %s26, 1
      %p222 = por %p220, %p221
      %p224 = scmp.ne.s32.totalorder %s207, %s223
      %p225 = scmp.eq.s32.totalorder %s26, 0
      %p226 = por %p224, %p225
      %p227 = scmp.le.s32.totalorder 1, %s20
      %p228 = scmp.lt.s32.totalorder %s20, 3
      %p229 = pnand %p227, %p228
      %p230 = pneg %p229
      // Predicated region
      $region9: #{tpu_custom_call.1} parent=5 // pred_check
        _
      $region10: #{tpu_custom_call.1} parent=5 // pred_check_branch
        %232 = sbr.rel (%p229) target = $region12
      $region11: #{tpu_custom_call.1} parent=5 // pred_region
        %s233 = ssub.s32 %s20, 1
        // Predicated region
        $region13: #{tpu_custom_call.1} parent=11 // pred_check
          %p234 = pneg %p67
        $region14: #{tpu_custom_call.1} parent=11 // pred_check_branch
          %236 = sbr.rel (%p234) target = $region16
        $region15: #{tpu_custom_call.1} parent=11 // pred_region
          _
        $region16: #{tpu_custom_call.1} parent=11 // pred_fallthru
          _
        // Predicated region
        $region17: #{tpu_custom_call.1} parent=11 // pred_check
          %p237 = pneg %p88
        $region18: #{tpu_custom_call.1} parent=11 // pred_check_branch
          %239 = sbr.rel (%p237) target = $region20
        $region19: #{tpu_custom_call.1} parent=11 // pred_region
          _
        $region20: #{tpu_custom_call.1} parent=11 // pred_fallthru
          _
        // Predicated region
        $region21: #{tpu_custom_call.1} parent=11 // pred_check
          %p240 = pneg %p109
        $region22: #{tpu_custom_call.1} parent=11 // pred_check_branch
          %242 = sbr.rel (%p240) target = $region24
        $region23: #{tpu_custom_call.1} parent=11 // pred_region
          _
        $region24: #{tpu_custom_call.1} parent=11 // pred_fallthru
          _
        // Predicated region
        $region25: #{tpu_custom_call.1} parent=11 // pred_check
          %p243 = pneg %p130
        $region26: #{tpu_custom_call.1} parent=11 // pred_check_branch
          %245 = sbr.rel (%p243) target = $region28
        $region27: #{tpu_custom_call.1} parent=11 // pred_region
          _
        $region28: #{tpu_custom_call.1} parent=11 // pred_fallthru
          _
        // Predicated region
        $region29: #{tpu_custom_call.1} parent=11 // pred_check
          %p246 = pneg %p151
        $region30: #{tpu_custom_call.1} parent=11 // pred_check_branch
          %248 = sbr.rel (%p246) target = $region32
        $region31: #{tpu_custom_call.1} parent=11 // pred_region
          _
        $region32: #{tpu_custom_call.1} parent=11 // pred_fallthru
          _
        // Predicated region
        $region33: #{tpu_custom_call.1} parent=11 // pred_check
          %p249 = pneg %p172
        $region34: #{tpu_custom_call.1} parent=11 // pred_check_branch
          %251 = sbr.rel (%p249) target = $region36
        $region35: #{tpu_custom_call.1} parent=11 // pred_region
          _
        $region36: #{tpu_custom_call.1} parent=11 // pred_fallthru
          _
        // Predicated region
        $region37: #{tpu_custom_call.1} parent=11 // pred_check
          %p252 = pneg %p193
        $region38: #{tpu_custom_call.1} parent=11 // pred_check_branch
          %254 = sbr.rel (%p252) target = $region40
        $region39: #{tpu_custom_call.1} parent=11 // pred_region
          _
        $region40: #{tpu_custom_call.1} parent=11 // pred_fallthru
          _
      $region12: #{tpu_custom_call.1} parent=5 // pred_fallthru
        _
      %p255 = scmp.lt.s32.totalorder %s20, 2
      // Predicated region
      $region41: #{tpu_custom_call.1} parent=5 // pred_check
        %p256 = pneg %p255
      $region42: #{tpu_custom_call.1} parent=5 // pred_check_branch
        %258 = sbr.rel (%p256) target = $region44
      $region43: #{tpu_custom_call.1} parent=5 // pred_region
        // Predicated region
        $region45: #{tpu_custom_call.1} parent=43 // pred_check
          %p259 = pneg %p40
        $region46: #{tpu_custom_call.1} parent=43 // pred_check_branch
          %261 = sbr.rel (%p259) target = $region48
        $region47: #{tpu_custom_call.1} parent=43 // pred_region
          %s262 = sand.u32 %s30, 1
          %s263 = scalar_lea.sflag [#allocation3], %s262
          %s264 = sand.u32 %s30, 1
          %s265 = smul.addr %s264, 96
          %s266 = scalar_lea.vmem [#allocation2], %s265
          %s267 = smul.u32 4, %s20
          %269 = vsyncadd %s263, 0
          %s270 = smul.addr %s267, 8
          %s271 = scalar_lea.hbm %s0, %s270
          %s272 = sshll.u32 %s271, 4
          %s273 = int_to_ptr.hbm [resolvable:$true] %s272
          %s274 = sshll.u32 %s266, 4
          %s275 = int_to_ptr.vmem [resolvable:$true] %s274
          %280 = dma.hbm_to_vmem [thread:$0]  %s273, 1536, %s275, %s263, 1024, 512, 32
        $region48: #{tpu_custom_call.1} parent=43 // pred_fallthru
          _
      $region44: #{tpu_custom_call.1} parent=5 // pred_fallthru
        _
      %p281 = scmp.le.s32.totalorder 1, %s20
      %p282 = scmp.lt.s32.totalorder %s20, 3
      %p283 = pnand %p281, %p282
      %p284 = pneg %p283
      // Predicated region
      $region49: #{tpu_custom_call.1} parent=5 // pred_check
        _
      $region50: #{tpu_custom_call.1} parent=5 // pred_check_branch
        %286 = sbr.rel (%p283) target = $region52
      $region51: #{tpu_custom_call.1} parent=5 // pred_region
        %s287 = ssub.s32 %s20, 1
        %s288 = sand.u32 %s33, 1
        %s289 = scalar_lea.sflag [#allocation3], %s288
        %s290 = sand.u32 %s33, 1
        %s291 = smul.addr %s290, 96
        %s292 = scalar_lea.vmem [#allocation2], %s291
        // Predicated region
        $region53: #{tpu_custom_call.1} parent=51 // pred_check
          %p293 = pneg %p46
        $region54: #{tpu_custom_call.1} parent=51 // pred_check_branch
          %295 = sbr.rel (%p293) target = $region56
        $region55: #{tpu_custom_call.1} parent=51 // pred_region
          %297 = dma.done %s289, 1536
        $region56: #{tpu_custom_call.1} parent=51 // pred_fallthru
          _
        %s298 = sand.u32 %s33, 1
        %s299 = scalar_lea.sflag [#allocation3], %s298
        %s300 = sand.u32 %s33, 1
        %s301 = smul.addr %s300, 96
        %s302 = scalar_lea.vmem [#allocation2], %s301
        %p303 = pneg %p46
        %p304 = pneg %p43
        %p305 = pneg %p67
        %p306 = pneg %p64
        %p307 = pneg %p88
        %p308 = pneg %p85
        %p309 = pneg %p109
        %p310 = pneg %p106
        %p311 = pneg %p130
        %p312 = pneg %p127
        %p313 = pneg %p151
        %p314 = pneg %p148
        %p315 = pneg %p172
        %p316 = pneg %p169
        %p317 = pneg %p193
        %p318 = pneg %p190
        %p319 = pneg %p219
        %p320 = pneg %p216
        %s321 = sand.u32 %s206, 1
        %s322 = scalar_lea.sflag [#allocation4], %s321
        %s323 = sand.u32 %s206, 1
        %s324 = smul.addr %s323, 32
        %s325 = scalar_lea.vmem [#allocation5], %s324
        %s326 = smul.u32 4, %s25
        %s327 = smul.u32 4, %s25
        %v328 = vld [vmem:[%s292] sm:$0xff]
        %v329 = vld [vmem:[%s292 + $0x8] sm:$0xff]
        %v330 = vld [vmem:[%s292 + $0x10] sm:$0xff]
        %v331 = vld [vmem:[%s292 + $0x18] sm:$0xff]
        %v332 = vld [vmem:[%s292 + $0x20] sm:$0xff]
        %v333 = vld [vmem:[%s292 + $0x28] sm:$0xff]
        %v334 = vld [vmem:[%s292 + $0x30] sm:$0xff]
        %v335 = vld [vmem:[%s292 + $0x38] sm:$0xff]
        %v336 = vld [vmem:[%s292 + $0x40] sm:$0xff]
        %v337 = vld [vmem:[%s292 + $0x48] sm:$0xff]
        %v338 = vld [vmem:[%s292 + $0x50] sm:$0xff]
        %v339 = vld [vmem:[%s292 + $0x58] sm:$0xff]
        %v340 = vld [vmem:[%s1] sm:$0xff]
        %v341 = vld [vmem:[%s1 + $0x8] sm:$0xff]
        %v342 = vld [vmem:[%s2] sm:$0xff]
        %v343 = vld [vmem:[%s2 + $0x8] sm:$0xff]
        %345 = vset.pattern.permute.xlu0 0
        %346 = vperm.xlu0 %345, %v342
        %v347 = vpop.permute.xlu0 %346
        %350 = vset.pattern.permute.xlu0 0
        %351 = vperm.xlu0 %350, %v343
        %v352 = vpop.permute.xlu0 %351
        %vm354 = vcmask 195584
        %v356 = vsel %vm354, %v340, 0
        %v359 = vsel %vm354, %v341, 0
        %361 = vmatpush.msra.mxu0 0.0
        %362 = vmatpush.msra.mxu0 0.0
        %363 = vmatpush.msra.mxu0 0.0
        %364 = vmatpush.msra.mxu0 0.0
        %365 = vmatpush.msra.mxu0 0.0
        %366 = vmatpush.msra.mxu0 0.0
        %367 = vmatpush.msra.mxu0 0.0
        %368 = vmatpush.msra.mxu0 0.0
        %369 = vmatpush.msra.mxu0 0.0
        %370 = vmatpush.msra.mxu0 0.0
        %371 = vmatpush.msra.mxu0 0.0
        %372 = vmatpush.msra.mxu0 0.0
        %373 = vmatpush.msra.mxu0 0.0
        %374 = vmatpush.msra.mxu0 %v336
        %375 = vmatpush.msra.mxu0 %v332
        %376 = vmatpush.msra.mxu0 %v328
        %377 = vmatmul.f32.gmra.mxu0 %v356
        %v378 = vpop.f32.mrf.mxu0
        %v379 = vadd.f32 %v347, %v378
        %380 = vmatmul.f32.gmra.mxu0 %v359
        %v381 = vpop.f32.mrf.mxu0
        %v382 = vadd.f32 %v352, %v381
        %383 = vdwg.mxu0
        %384 = vmatpush.msra.mxu0 0.0
        %385 = vmatpush.msra.mxu0 0.0
        %386 = vmatpush.msra.mxu0 0.0
        %387 = vmatpush.msra.mxu0 0.0
        %388 = vmatpush.msra.mxu0 0.0
        %389 = vmatpush.msra.mxu0 0.0
        %390 = vmatpush.msra.mxu0 0.0
        %391 = vmatpush.msra.mxu0 0.0
        %392 = vmatpush.msra.mxu0 0.0
        %393 = vmatpush.msra.mxu0 0.0
        %394 = vmatpush.msra.mxu0 0.0
        %395 = vmatpush.msra.mxu0 0.0
        %396 = vmatpush.msra.mxu0 0.0
        %397 = vmatpush.msra.mxu0 %v337
        %398 = vmatpush.msra.mxu0 %v333
        %399 = vmatpush.msra.mxu0 %v329
        %400 = vmatmul.f32.gmra.mxu0 %v356
        %v401 = vpop.f32.mrf.mxu0
        %v402 = vadd.f32 %v347, %v401
        %403 = vmatmul.f32.gmra.mxu0 %v359
        %v404 = vpop.f32.mrf.mxu0
        %v405 = vadd.f32 %v352, %v404
        %406 = vdwg.mxu0
        %407 = vmatpush.msra.mxu0 0.0
        %408 = vmatpush.msra.mxu0 0.0
        %409 = vmatpush.msra.mxu0 0.0
        %410 = vmatpush.msra.mxu0 0.0
        %411 = vmatpush.msra.mxu0 0.0
        %412 = vmatpush.msra.mxu0 0.0
        %413 = vmatpush.msra.mxu0 0.0
        %414 = vmatpush.msra.mxu0 0.0
        %415 = vmatpush.msra.mxu0 0.0
        %416 = vmatpush.msra.mxu0 0.0
        %417 = vmatpush.msra.mxu0 0.0
        %418 = vmatpush.msra.mxu0 0.0
        %419 = vmatpush.msra.mxu0 0.0
        %420 = vmatpush.msra.mxu0 %v338
        %421 = vmatpush.msra.mxu0 %v334
        %422 = vmatpush.msra.mxu0 %v330
        %423 = vmatmul.f32.gmra.mxu0 %v356
        %v424 = vpop.f32.mrf.mxu0
        %v425 = vadd.f32 %v347, %v424
        %426 = vmatmul.f32.gmra.mxu0 %v359
        %v427 = vpop.f32.mrf.mxu0
        %v428 = vadd.f32 %v352, %v427
        %429 = vdwg.mxu0
        %430 = vmatpush.msra.mxu0 0.0
        %431 = vmatpush.msra.mxu0 0.0
        %432 = vmatpush.msra.mxu0 0.0
        %433 = vmatpush.msra.mxu0 0.0
        %434 = vmatpush.msra.mxu0 0.0
        %435 = vmatpush.msra.mxu0 0.0
        %436 = vmatpush.msra.mxu0 0.0
        %437 = vmatpush.msra.mxu0 0.0
        %438 = vmatpush.msra.mxu0 0.0
        %439 = vmatpush.msra.mxu0 0.0
        %440 = vmatpush.msra.mxu0 0.0
        %441 = vmatpush.msra.mxu0 0.0
        %442 = vmatpush.msra.mxu0 0.0
        %443 = vmatpush.msra.mxu0 %v339
        %444 = vmatpush.msra.mxu0 %v335
        %445 = vmatpush.msra.mxu0 %v331
        %446 = vmatmul.f32.gmra.mxu0 %v356
        %v447 = vpop.f32.mrf.mxu0
        %v448 = vadd.f32 %v347, %v447
        %449 = vmatmul.f32.gmra.mxu0 %v359
        %v450 = vpop.f32.mrf.mxu0
        %v451 = vadd.f32 %v352, %v450
        %452 = vdwg.mxu0
        %v453 = vmax.f32 %v379, 0.0
        %v454 = vmax.f32 %v402, 0.0
        %v455 = vmax.f32 %v425, 0.0
        %v456 = vmax.f32 %v448, 0.0
        %v457 = vmax.f32 %v382, 0.0
        %v458 = vmax.f32 %v405, 0.0
        %v459 = vmax.f32 %v428, 0.0
        %v460 = vmax.f32 %v451, 0.0
        %v461 = vld [vmem:[%s3] sm:$0xff]
        %v462 = vld [vmem:[%s3 + $0x8] sm:$0xff]
        %v463 = vld [vmem:[%s4] sm:$0xff]
        %v464 = vld [vmem:[%s4 + $0x8] sm:$0xff]
        %466 = vset.pattern.permute.xlu0 0
        %467 = vperm.xlu0 %466, %v463
        %v468 = vpop.permute.xlu0 %467
        %471 = vset.pattern.permute.xlu0 0
        %472 = vperm.xlu0 %471, %v464
        %v473 = vpop.permute.xlu0 %472
        %vm475 = vcmask 130048
        %v477 = vsel %vm475, %v461, 0
        %v480 = vsel %vm475, %v462, 0
        %482 = vmatpush.msra.mxu0 0.0
        %483 = vmatpush.msra.mxu0 0.0
        %484 = vmatpush.msra.mxu0 0.0
        %485 = vmatpush.msra.mxu0 0.0
        %486 = vmatpush.msra.mxu0 0.0
        %487 = vmatpush.msra.mxu0 0.0
        %488 = vmatpush.msra.mxu0 0.0
        %489 = vmatpush.msra.mxu0 0.0
        %490 = vmatpush.msra.mxu0 0.0
        %491 = vmatpush.msra.mxu0 0.0
        %492 = vmatpush.msra.mxu0 0.0
        %493 = vmatpush.msra.mxu0 0.0
        %494 = vmatpush.msra.mxu0 0.0
        %495 = vmatpush.msra.mxu0 0.0
        %496 = vmatpush.msra.mxu0 %v457
        %497 = vmatpush.msra.mxu0 %v453
        %498 = vmatmul.f32.gmra.mxu0 %v477
        %v499 = vpop.f32.mrf.mxu0
        %v500 = vadd.f32 %v468, %v499
        %501 = vmatmul.f32.gmra.mxu0 %v480
        %v502 = vpop.f32.mrf.mxu0
        %v503 = vadd.f32 %v473, %v502
        %504 = vdwg.mxu0
        %505 = vmatpush.msra.mxu0 0.0
        %506 = vmatpush.msra.mxu0 0.0
        %507 = vmatpush.msra.mxu0 0.0
        %508 = vmatpush.msra.mxu0 0.0
        %509 = vmatpush.msra.mxu0 0.0
        %510 = vmatpush.msra.mxu0 0.0
        %511 = vmatpush.msra.mxu0 0.0
        %512 = vmatpush.msra.mxu0 0.0
        %513 = vmatpush.msra.mxu0 0.0
        %514 = vmatpush.msra.mxu0 0.0
        %515 = vmatpush.msra.mxu0 0.0
        %516 = vmatpush.msra.mxu0 0.0
        %517 = vmatpush.msra.mxu0 0.0
        %518 = vmatpush.msra.mxu0 0.0
        %519 = vmatpush.msra.mxu0 %v458
        %520 = vmatpush.msra.mxu0 %v454
        %521 = vmatmul.f32.gmra.mxu0 %v477
        %v522 = vpop.f32.mrf.mxu0
        %v523 = vadd.f32 %v468, %v522
        %524 = vmatmul.f32.gmra.mxu0 %v480
        %v525 = vpop.f32.mrf.mxu0
        %v526 = vadd.f32 %v473, %v525
        %527 = vdwg.mxu0
        %528 = vmatpush.msra.mxu0 0.0
        %529 = vmatpush.msra.mxu0 0.0
        %530 = vmatpush.msra.mxu0 0.0
        %531 = vmatpush.msra.mxu0 0.0
        %532 = vmatpush.msra.mxu0 0.0
        %533 = vmatpush.msra.mxu0 0.0
        %534 = vmatpush.msra.mxu0 0.0
        %535 = vmatpush.msra.mxu0 0.0
        %536 = vmatpush.msra.mxu0 0.0
        %537 = vmatpush.msra.mxu0 0.0
        %538 = vmatpush.msra.mxu0 0.0
        %539 = vmatpush.msra.mxu0 0.0
        %540 = vmatpush.msra.mxu0 0.0
        %541 = vmatpush.msra.mxu0 0.0
        %542 = vmatpush.msra.mxu0 %v459
        %543 = vmatpush.msra.mxu0 %v455
        %544 = vmatmul.f32.gmra.mxu0 %v477
        %v545 = vpop.f32.mrf.mxu0
        %v546 = vadd.f32 %v468, %v545
        %547 = vmatmul.f32.gmra.mxu0 %v480
        %v548 = vpop.f32.mrf.mxu0
        %v549 = vadd.f32 %v473, %v548
        %550 = vdwg.mxu0
        %551 = vmatpush.msra.mxu0 0.0
        %552 = vmatpush.msra.mxu0 0.0
        %553 = vmatpush.msra.mxu0 0.0
        %554 = vmatpush.msra.mxu0 0.0
        %555 = vmatpush.msra.mxu0 0.0
        %556 = vmatpush.msra.mxu0 0.0
        %557 = vmatpush.msra.mxu0 0.0
        %558 = vmatpush.msra.mxu0 0.0
        %559 = vmatpush.msra.mxu0 0.0
        %560 = vmatpush.msra.mxu0 0.0
        %561 = vmatpush.msra.mxu0 0.0
        %562 = vmatpush.msra.mxu0 0.0
        %563 = vmatpush.msra.mxu0 0.0
        %564 = vmatpush.msra.mxu0 0.0
        %565 = vmatpush.msra.mxu0 %v460
        %566 = vmatpush.msra.mxu0 %v456
        %567 = vmatmul.f32.gmra.mxu0 %v477
        %v568 = vpop.f32.mrf.mxu0
        %v569 = vadd.f32 %v468, %v568
        %570 = vmatmul.f32.gmra.mxu0 %v480
        %v571 = vpop.f32.mrf.mxu0
        %v572 = vadd.f32 %v473, %v571
        %573 = vdwg.mxu0
        %v574 = vmax.f32 %v500, 0.0
        %v575 = vmax.f32 %v523, 0.0
        %v576 = vmax.f32 %v546, 0.0
        %v577 = vmax.f32 %v569, 0.0
        %v578 = vmax.f32 %v503, 0.0
        %v579 = vmax.f32 %v526, 0.0
        %v580 = vmax.f32 %v549, 0.0
        %v581 = vmax.f32 %v572, 0.0
        %v582 = vld [vmem:[%s5] sm:$0x7f]
        %v583 = vld [vmem:[%s6] sm:$0x7f]
        %585 = vset.pattern.permute.xlu0 0
        %586 = vperm.xlu0 %585, %v583
        %v587 = vpop.permute.xlu0 %586
        %v590 = vsel %vm475, %v582, 0
        %592 = vmatpush.msra.mxu0 0.0
        %593 = vmatpush.msra.mxu0 0.0
        %594 = vmatpush.msra.mxu0 0.0
        %595 = vmatpush.msra.mxu0 0.0
        %596 = vmatpush.msra.mxu0 0.0
        %597 = vmatpush.msra.mxu0 0.0
        %598 = vmatpush.msra.mxu0 0.0
        %599 = vmatpush.msra.mxu0 0.0
        %600 = vmatpush.msra.mxu0 0.0
        %601 = vmatpush.msra.mxu0 0.0
        %602 = vmatpush.msra.mxu0 0.0
        %603 = vmatpush.msra.mxu0 0.0
        %604 = vmatpush.msra.mxu0 0.0
        %605 = vmatpush.msra.mxu0 0.0
        %606 = vmatpush.msra.mxu0 %v578
        %607 = vmatpush.msra.mxu0 %v574
        %608 = vmatmul.f32.gmra.mxu0 %v590
        %v609 = vpop.f32.mrf.mxu0
        %v610 = vadd.f32 %v587, %v609
        %611 = vdwg.mxu0
        %612 = vmatpush.msra.mxu0 0.0
        %613 = vmatpush.msra.mxu0 0.0
        %614 = vmatpush.msra.mxu0 0.0
        %615 = vmatpush.msra.mxu0 0.0
        %616 = vmatpush.msra.mxu0 0.0
        %617 = vmatpush.msra.mxu0 0.0
        %618 = vmatpush.msra.mxu0 0.0
        %619 = vmatpush.msra.mxu0 0.0
        %620 = vmatpush.msra.mxu0 0.0
        %621 = vmatpush.msra.mxu0 0.0
        %622 = vmatpush.msra.mxu0 0.0
        %623 = vmatpush.msra.mxu0 0.0
        %624 = vmatpush.msra.mxu0 0.0
        %625 = vmatpush.msra.mxu0 0.0
        %626 = vmatpush.msra.mxu0 %v579
        %627 = vmatpush.msra.mxu0 %v575
        %628 = vmatmul.f32.gmra.mxu0 %v590
        %v629 = vpop.f32.mrf.mxu0
        %v630 = vadd.f32 %v587, %v629
        %631 = vdwg.mxu0
        %632 = vmatpush.msra.mxu0 0.0
        %633 = vmatpush.msra.mxu0 0.0
        %634 = vmatpush.msra.mxu0 0.0
        %635 = vmatpush.msra.mxu0 0.0
        %636 = vmatpush.msra.mxu0 0.0
        %637 = vmatpush.msra.mxu0 0.0
        %638 = vmatpush.msra.mxu0 0.0
        %639 = vmatpush.msra.mxu0 0.0
        %640 = vmatpush.msra.mxu0 0.0
        %641 = vmatpush.msra.mxu0 0.0
        %642 = vmatpush.msra.mxu0 0.0
        %643 = vmatpush.msra.mxu0 0.0
        %644 = vmatpush.msra.mxu0 0.0
        %645 = vmatpush.msra.mxu0 0.0
        %646 = vmatpush.msra.mxu0 %v580
        %647 = vmatpush.msra.mxu0 %v576
        %648 = vmatmul.f32.gmra.mxu0 %v590
        %v649 = vpop.f32.mrf.mxu0
        %v650 = vadd.f32 %v587, %v649
        %651 = vdwg.mxu0
        %652 = vmatpush.msra.mxu0 0.0
        %653 = vmatpush.msra.mxu0 0.0
        %654 = vmatpush.msra.mxu0 0.0
        %655 = vmatpush.msra.mxu0 0.0
        %656 = vmatpush.msra.mxu0 0.0
        %657 = vmatpush.msra.mxu0 0.0
        %658 = vmatpush.msra.mxu0 0.0
        %659 = vmatpush.msra.mxu0 0.0
        %660 = vmatpush.msra.mxu0 0.0
        %661 = vmatpush.msra.mxu0 0.0
        %662 = vmatpush.msra.mxu0 0.0
        %663 = vmatpush.msra.mxu0 0.0
        %664 = vmatpush.msra.mxu0 0.0
        %665 = vmatpush.msra.mxu0 0.0
        %666 = vmatpush.msra.mxu0 %v581
        %667 = vmatpush.msra.mxu0 %v577
        %668 = vmatmul.f32.gmra.mxu0 %v590
        %v669 = vpop.f32.mrf.mxu0
        %v670 = vadd.f32 %v587, %v669
        %671 = vdwg.mxu0
        %v672 = vtanh.pop %v610
        %v673 = vtanh.pop %v630
        %v674 = vtanh.pop %v650
        %v675 = vtanh.pop %v670
        %v676 = vld [vmem:[%s7] sm:$0x7f]
        %678 = vset.pattern.permute.xlu0 0
        %679 = vperm.xlu0 %678, %v676
        %v680 = vpop.permute.xlu0 %679
        %v682 = vmul.f32 %v672, %v680
        %v683 = vmul.f32 %v673, %v680
        %v684 = vmul.f32 %v674, %v680
        %v685 = vmul.f32 %v675, %v680
        %686 = vst [vmem:[%s325] sm:$0x7f] %v682
        %687 = vst [vmem:[%s325 + $0x8] sm:$0x7f] %v683
        %688 = vst [vmem:[%s325 + $0x10] sm:$0x7f] %v684
        %689 = vst [vmem:[%s325 + $0x18] sm:$0x7f] %v685
        %s690 = sand.u32 %s206, 1
        %s691 = scalar_lea.sflag [#allocation4], %s690
        %s692 = sand.u32 %s206, 1
        %s693 = smul.addr %s692, 32
        %s694 = scalar_lea.vmem [#allocation5], %s693
        // Predicated region
        $region57: #{tpu_custom_call.1} parent=51 // pred_check
          %p695 = pneg %p216
        $region58: #{tpu_custom_call.1} parent=51 // pred_check_branch
          %697 = sbr.rel (%p695) target = $region60
        $region59: #{tpu_custom_call.1} parent=51 // pred_region
          %s698 = smul.u32 4, %s25
          %700 = vsyncadd %s691, 0
          %s701 = smul.addr %s698, 8
          %s702 = scalar_lea.hbm %s8, %s701
          %s704 = sshll.u32 %s694, 4
          %s705 = int_to_ptr.vmem [resolvable:$true] %s704
          %s706 = sshll.u32 %s702, 4
          %s707 = int_to_ptr.hbm [resolvable:$true] %s706
          %709 = dma.vmem_to_hbm [thread:$0]  %s705, 512, %s707, %s691
        $region60: #{tpu_custom_call.1} parent=51 // pred_fallthru
          _
      $region52: #{tpu_custom_call.1} parent=5 // pred_fallthru
        _
      %p710 = scmp.le.s32.totalorder 2, %s20
      // Predicated region
      $region61: #{tpu_custom_call.1} parent=5 // pred_check
        %p711 = pneg %p710
      $region62: #{tpu_custom_call.1} parent=5 // pred_check_branch
        %713 = sbr.rel (%p711) target = $region64
      $region63: #{tpu_custom_call.1} parent=5 // pred_region
        %s714 = ssub.s32 %s20, 2
        // Predicated region
        $region65: #{tpu_custom_call.1} parent=63 // pred_check
          %p715 = pneg %p222
        $region66: #{tpu_custom_call.1} parent=63 // pred_check_branch
          %717 = sbr.rel (%p715) target = $region68
        $region67: #{tpu_custom_call.1} parent=63 // pred_region
          %s718 = sand.u32 %s207, 1
          %s719 = scalar_lea.sflag [#allocation4], %s718
          %s720 = sand.u32 %s207, 1
          %s721 = smul.addr %s720, 32
          %s722 = scalar_lea.vmem [#allocation5], %s721
          %724 = dma.done %s719, 512
        $region68: #{tpu_custom_call.1} parent=63 // pred_fallthru
          _
      $region64: #{tpu_custom_call.1} parent=5 // pred_fallthru
        _
    $region6: #{tpu_custom_call.1} parent=1 // loop_footer
      %s24 = sadd.s32 1, %s20
    $region7: #{tpu_custom_call.1} parent=1 // loop_footer_branch
      %19 = sbr.rel target = $region3
    $region8: #{tpu_custom_call.1} parent=1 // loop_exit
      _
    %725 = vsyncpa [#allocation3], 1
    %s726 = scalar_lea.sflag [#allocation3], 1
    %727 = vsyncpa %s726, 1
    %728 = vsyncpa [#allocation4], 1
    %s729 = scalar_lea.sflag [#allocation4], 1
    %730 = vsyncpa %s729, 1

</llo_original>
